<compile_context>
chip_gen: v6e
topology: v6e:2x2x1
jax: 0.10.0
libtpu: 0.0.40
codegen_flags: <defaults>
</compile_context>

<pallas_src>
import functools

import jax
import jax.numpy as jnp
from jax.experimental import pallas as pl
from jax.experimental.pallas import tpu as pltpu


_SINGLE_BUFFER_MIN_BYTES = 1 << 20   # only single-buffer blocks big enough to matter


def _round_up(x, m):
    return (x + m - 1) // m * m


def _vmem_capacity_bytes():
    try:
        cap = int(pltpu.get_tpu_info().vmem_capacity_bytes)
        if cap > 0:
            return cap
    except Exception:
        pass
    return 64 * 1024 * 1024          # conservative default (v7x per-core VMEM)


def _tile_bytes(tp, kc, cout_pad, op_size, out_size):
    return (2 * tp * kc * op_size            # im2col patch scratch + tap temporaries
            + tp * cout_pad * 4              # f32 matmul result / elementwise temps
            + 2 * tp * cout_pad * out_size)  # double-buffered output block


def _pick_tile_rows(ho, wo, kc, cout_pad, op_size, out_size, resident, budget,
                    max_rows=None):
    """Largest divisor of `ho` (keeping output blocks (8,128)-friendly) whose
    total VMEM footprint (resident blocks + per-tile working set) fits `budget`."""
    fallback = None
    for d in range(ho, 0, -1):
        if ho % d:
            continue
        if d != ho and (d * wo) % 8:         # keep output blocks (8,128)-friendly
            continue
        if max_rows is not None and d > max_rows:
            continue
        fallback = d                         # descending -> ends at smallest valid
        if resident + _tile_bytes(d * wo, kc, cout_pad, op_size, out_size) <= budget:
            return d
    return fallback if fallback is not None else ho


def _resident_spec(block_shape, index_map, block_bytes):
    """BlockSpec for an operand whose block index never changes along the spatial
    grid axis.  Large blocks request a single VMEM buffer (Pallas would otherwise
    double-buffer them even though they are only re-fetched per batch)."""
    if block_bytes >= _SINGLE_BUFFER_MIN_BYTES:
        try:
            return pl.BlockSpec(block_shape, index_map,
                                pipeline_mode=pl.Buffered(1)), 1
        except Exception:                    # older jax: no pipeline_mode support
            pass
    return pl.BlockSpec(block_shape, index_map), 2


# --------------------------------------------------------------------------- #
# Kernels
# --------------------------------------------------------------------------- #
def _conv_tile(x_ref, w_ref, patch_ref, *, tho, wo, c4):
    """k=4/s=2 conv for one spatial tile of `tho` output rows.

    x_ref block : (1, Ho+1, Wo+1, 4*Cin)  space-to-depth'd padded input (one batch)
    w_ref block : (16*Cin, Cout_pad)      tap-major im2col weight
    patch_ref   : (tho*wo, 16*Cin)        VMEM scratch for the im2col patch
    Returns f32 [tho*wo, Cout_pad] (bias NOT added).
    """
    tp = tho * wo
    r0 = pl.program_id(1) * tho
    if tho % 8 == 0:
        r0 = pl.multiple_of(r0, 8)
    # Pack the 4 conv taps into one full-depth patch, then a single MXU matmul
    # with K = 16*Cin so accumulation stays inside the MXU (no VPU partial sums).
    for idx, (a, b) in enumerate(((0, 0), (0, 1), (1, 0), (1, 1))):
        t = x_ref[0, pl.ds(r0 + a, tho), pl.ds(b, wo), :]       # [tho, wo, c4]
        patch_ref[:, pl.ds(idx * c4, c4)] = t.reshape(tp, c4)
    return jnp.dot(patch_ref[...], w_ref[...], preferred_element_type=jnp.float32)


def _conv_lrelu_kernel(x_ref, w_ref, b_ref, o_ref, patch_ref, *, tho, wo, c4,
                       neg_slope):
    # normalize=False: conv + bias + LeakyReLU fused in one pass.
    y = _conv_tile(x_ref, w_ref, patch_ref, tho=tho, wo=wo, c4=c4) + b_ref[...]
    o_ref[0] = jnp.where(y >= 0, y, neg_slope * y).astype(o_ref.dtype)


def _conv_stats_kernel(x_ref, w_ref, mean_ref, m2_ref, patch_ref, *, tho, wo, c4):
    # normalize=True pass 1: per-(batch, channel) mean / sum-of-squared-deviations
    # accumulated across the spatial grid axis ("arbitrary") with a Welford/Chan
    # combination of per-tile statistics.  Only the tiny stats are written to HBM;
    # the conv activations are recomputed in pass 2.
    # The conv bias is skipped here: it cancels exactly under instance norm.
    i = pl.program_id(1)
    y = _conv_tile(x_ref, w_ref, patch_ref, tho=tho, wo=wo, c4=c4)
    tp = tho * wo
    m_t = jnp.mean(y, axis=0, keepdims=True)                     # (1, Cout_pad)
    d_t = y - m_t
    m2_t = jnp.sum(d_t * d_t, axis=0, keepdims=True)             # (1, Cout_pad)

    @pl.when(i == 0)
    def _():
        mean_ref[0] = m_t
        m2_ref[0] = m2_t

    @pl.when(i > 0)
    def _():
        # Chan/Welford merge of equal-count (tp) partial statistics.
        cnt = i.astype(jnp.float32)
        delta = m_t - mean_ref[0]
        mean_ref[0] = mean_ref[0] + delta / (cnt + 1.0)
        m2_ref[0] = m2_ref[0] + m2_t + (delta * delta) * (float(tp) * cnt / (cnt + 1.0))


def _conv_norm_lrelu_kernel(x_ref, w_ref, mean_ref, m2_ref, o_ref, patch_ref, *,
                            tho, wo, c4, inv_p, eps, neg_slope):
    # normalize=True pass 2: recompute the conv tile, fuse instance-norm +
    # LeakyReLU.  var = M2 / P (biased, like nn.InstanceNorm2d).
    y = _conv_tile(x_ref, w_ref, patch_ref, tho=tho, wo=wo, c4=c4)
    inv_std = jax.lax.rsqrt(m2_ref[0] * inv_p + eps)              # (1, Cout_pad)
    z = (y - mean_ref[0]) * inv_std
    o_ref[0] = jnp.where(z >= 0, z, neg_slope * z).astype(o_ref.dtype)


# --------------------------------------------------------------------------- #
# Wrapper
# --------------------------------------------------------------------------- #
def discriminator_block(x_nchw, weight, bias, *, normalize, eps=1e-5,
                        neg_slope=0.2, matmul_dtype=jnp.bfloat16,
                        max_tile_rows=None):
    """x_nchw: [N, Cin, H, W]; weight: [Cout, Cin, 4, 4] (PyTorch layout); bias: [Cout]."""
    k, stride, pad = 4, 2, 1
    n, cin, h, w = x_nchw.shape
    cout = weight.shape[0]
    ho = (h + 2 * pad - k) // stride + 1
    wo = (w + 2 * pad - k) // stride + 1
    p = ho * wo

    cinp = _round_up(cin, 8)          # K = 16*cinp becomes a multiple of 128
    cout_pad = _round_up(cout, 128)   # lane-dense (unmasked) output stores
    c4 = 4 * cinp
    kc = 4 * c4
    out_dtype = x_nchw.dtype
    if matmul_dtype is None:
        matmul_dtype = x_nchw.dtype
    op_size = jnp.dtype(matmul_dtype).itemsize
    out_size = jnp.dtype(out_dtype).itemsize

    # ---- Input: cast FIRST (halves the layout-pass HBM traffic for bf16), then
    # NCHW -> NHWC, zero-pad channels + spatial, crop, 2x2 space-to-depth.
    # TODO(synk): a chain of blocks should stay in this padded-NHWC/space-to-depth
    # layout end-to-end and only convert to NCHW once at the end of the network.
    x = jnp.transpose(x_nchw, (0, 2, 3, 1)).astype(matmul_dtype)
    x = jnp.pad(x, ((0, 0), (pad, pad), (pad, pad), (0, cinp - cin)))
    x = x[:, :2 * ho + 2, :2 * wo + 2, :]
    x = x.reshape(n, ho + 1, 2, wo + 1, 2, cinp)
    x_s2d = jnp.transpose(x, (0, 1, 3, 2, 4, 5)).reshape(n, ho + 1, wo + 1, c4)

    # ---- Weight: (Cout, Cin, ki, kj) -> rows ordered (tap_a, tap_b, r, s, cin),
    # matching the space-to-depth channel order; zero-pad Cin and Cout.
    wpad = jnp.pad(weight, ((0, cout_pad - cout), (0, cinp - cin), (0, 0), (0, 0)))
    w6 = wpad.reshape(cout_pad, cinp, 2, 2, 2, 2)                 # (o, c, a, r, b, s)
    w_mat = jnp.transpose(w6, (2, 4, 3, 5, 1, 0)).reshape(kc, cout_pad)
    w_mat = w_mat.astype(matmul_dtype)
    b_mat = jnp.pad(bias, (0, cout_pad - cout)).reshape(1, cout_pad).astype(jnp.float32)

    # ---- Resident operands (block index constant along the spatial grid axis).
    x_block_bytes = (ho + 1) * (wo + 1) * c4 * op_size
    w_block_bytes = kc * cout_pad * op_size
    x_spec, x_bufs = _resident_spec((1, ho + 1, wo + 1, c4),
                                    lambda nb, i: (nb, 0, 0, 0), x_block_bytes)
    w_spec, w_bufs = _resident_spec((kc, cout_pad), lambda nb, i: (0, 0),
                                    w_block_bytes)
    b_spec = pl.BlockSpec((1, cout_pad), lambda nb, i: (0, 0))

    # ---- Generation-aware VMEM budget and spatial tile size.
    # TODO(synk): if even the single-buffered per-batch x block cannot fit VMEM,
    # switch x to memory_space=pl.ANY and manually DMA tho+1 halo rows per tile.
    resident = (x_bufs * x_block_bytes + w_bufs * w_block_bytes
                + 8 * cout_pad * 4)           # + bias / stats blocks (tiny)
    vmem_cap = _vmem_capacity_bytes()
    tho = _pick_tile_rows(ho, wo, kc, cout_pad, op_size, out_size,
                          resident, vmem_cap - (8 << 20), max_tile_rows)
    tp = tho * wo
    n_tiles = ho // tho
    need = resident + _tile_bytes(tp, kc, cout_pad, op_size, out_size)
    vmem_limit = int(min(max(vmem_cap - (2 << 20), 16 << 20),
                         max(need + (16 << 20), 32 << 20)))

    out_spec = pl.BlockSpec((1, tp, cout_pad), lambda nb, i: (nb, i, 0))
    stat_spec = pl.BlockSpec((1, 1, cout_pad), lambda nb, i: (nb, 0, 0))
    patch_scratch = pltpu.VMEM((tp, kc), matmul_dtype)

    if not normalize:
        out = pl.pallas_call(
            functools.partial(_conv_lrelu_kernel, tho=tho, wo=wo, c4=c4,
                              neg_slope=neg_slope),
            out_shape=jax.ShapeDtypeStruct((n, p, cout_pad), out_dtype),
            grid_spec=pltpu.PrefetchScalarGridSpec(
                num_scalar_prefetch=0,
                grid=(n, n_tiles),
                in_specs=[x_spec, w_spec, b_spec],
                out_specs=out_spec,
                scratch_shapes=[patch_scratch]),
            compiler_params=pltpu.CompilerParams(
                dimension_semantics=("parallel", "parallel"),
                vmem_limit_bytes=vmem_limit),
        )(x_s2d, w_mat, b_mat)
    else:
        # Pass 1: Welford stats only (no activation round-trip through HBM).
        # TODO(synk): on v7x with N == 1, split the spatial axis into two parallel
        # halves (one per TensorCore) and combine the per-half partial stats.
        mean, m2 = pl.pallas_call(
            functools.partial(_conv_stats_kernel, tho=tho, wo=wo, c4=c4),
            out_shape=(jax.ShapeDtypeStruct((n, 1, cout_pad), jnp.float32),
                       jax.ShapeDtypeStruct((n, 1, cout_pad), jnp.float32)),
            grid_spec=pltpu.PrefetchScalarGridSpec(
                num_scalar_prefetch=0,
                grid=(n, n_tiles),
                in_specs=[x_spec, w_spec],
                out_specs=[stat_spec, stat_spec],
                scratch_shapes=[patch_scratch]),
            compiler_params=pltpu.CompilerParams(
                dimension_semantics=("parallel", "arbitrary"),
                vmem_limit_bytes=vmem_limit),
        )(x_s2d, w_mat)

        # Pass 2: recompute the conv, fuse instance-norm + LeakyReLU.
        out = pl.pallas_call(
            functools.partial(_conv_norm_lrelu_kernel, tho=tho, wo=wo, c4=c4,
                              inv_p=1.0 / p, eps=eps, neg_slope=neg_slope),
            out_shape=jax.ShapeDtypeStruct((n, p, cout_pad), out_dtype),
            grid_spec=pltpu.PrefetchScalarGridSpec(
                num_scalar_prefetch=0,
                grid=(n, n_tiles),
                in_specs=[x_spec, w_spec, stat_spec, stat_spec],
                out_specs=out_spec,
                scratch_shapes=[patch_scratch]),
            compiler_params=pltpu.CompilerParams(
                dimension_semantics=("parallel", "parallel"),
                vmem_limit_bytes=vmem_limit),
        )(x_s2d, w_mat, mean, m2)

    # Slice off channel padding; back to the PyTorch NCHW convention.
    out = out[:, :, :cout].reshape(n, ho, wo, cout)
    return jnp.transpose(out, (0, 3, 1, 2))


def _reference(x, w, b, *, normalize, eps=1e-5, neg_slope=0.2):
    """Pure-JAX reference matching the PyTorch module."""
    y = jax.lax.conv_general_dilated(
        x, w, window_strides=(2, 2), padding=((1, 1), (1, 1)),
        dimension_numbers=("NCHW", "OIHW", "NCHW"),
        precision=jax.lax.Precision.HIGHEST)
    y = y + b.reshape(1, -1, 1, 1)
    if normalize:
        mean = jnp.mean(y, axis=(2, 3), keepdims=True)
        var = jnp.var(y, axis=(2, 3), keepdims=True)    # biased, like InstanceNorm2d
        y = (y - mean) * jax.lax.rsqrt(var + eps)
    return jnp.where(y >= 0, y, neg_slope * y)


if __name__ == "__main__":
    key = jax.random.PRNGKey(0)
    n, cin, hh, ww = 2, 4, 16, 16
    cout = 8

    kx, kw, kb = jax.random.split(key, 3)
    x = jax.random.normal(kx, (n, cin, hh, ww), dtype=jnp.float32)

    # Deterministic params mimicking PyTorch Conv2d default init.
    fan_in = cin * 4 * 4
    bound = 1.0 / (fan_in ** 0.5)
    weight = jax.random.uniform(kw, (cout, cin, 4, 4), minval=-bound, maxval=bound,
                                dtype=jnp.float32)
    bias = jax.random.uniform(kb, (cout,), minval=-bound, maxval=bound,
                              dtype=jnp.float32)

    # Default path (bf16 MXU operands, f32 accumulation / norm math).
    y_norm = discriminator_block(x, weight, bias, normalize=True)
    y_plain = discriminator_block(x, weight, bias, normalize=False)
    # Exact-f32 matmul path for tight validation.
    y_norm_f32 = discriminator_block(x, weight, bias, normalize=True,
                                     matmul_dtype=jnp.float32)
    y_plain_f32 = discriminator_block(x, weight, bias, normalize=False,
                                      matmul_dtype=jnp.float32)
    # Force multiple spatial tiles to exercise the tiled path and the
    # Welford cross-tile stats combination.
    y_norm_tiled = discriminator_block(x, weight, bias, normalize=True,
                                       matmul_dtype=jnp.float32, max_tile_rows=2)
    y_plain_tiled = discriminator_block(x, weight, bias, normalize=False,
                                        matmul_dtype=jnp.float32, max_tile_rows=2)
    jax.block_until_ready((y_norm, y_plain, y_norm_f32, y_plain_f32,
                           y_norm_tiled, y_plain_tiled))

    assert y_norm.shape == (n, cout, hh // 2, ww // 2)
    assert y_plain.shape == (n, cout, hh // 2, ww // 2)

    ref_norm = _reference(x, weight, bias, normalize=True)
    ref_plain = _reference(x, weight, bias, normalize=False)

    def _max_err(a, b):
        return float(jnp.max(jnp.abs(a - b)))

    assert _max_err(y_plain_f32, ref_plain) < 2e-3, _max_err(y_plain_f32, ref_plain)
    assert _max_err(y_norm_f32, ref_norm) < 2e-3, _max_err(y_norm_f32, ref_norm)
    assert _max_err(y_plain_tiled, ref_plain) < 2e-3, _max_err(y_plain_tiled, ref_plain)
    assert _max_err(y_norm_tiled, ref_norm) < 2e-3, _max_err(y_norm_tiled, ref_norm)
    assert _max_err(y_plain, ref_plain) < 6e-2, _max_err(y_plain, ref_plain)
    assert _max_err(y_norm, ref_norm) < 6e-2, _max_err(y_norm, ref_norm)

    print("KERNEL_OK")
</pallas_src>

<mosaic_0001>
module attributes {stable_mosaic.version = 11 : i64} {
  func.func @_conv_stats_kernel(%arg0: i32, %arg1: i32, %arg2: memref<1x9x9x32xbf16, #tpu.memory_space<vmem>>, %arg3: memref<128x128xbf16, #tpu.memory_space<vmem>>, %arg4: memref<1x1x128xf32, #tpu.memory_space<vmem>>, %arg5: memref<1x1x128xf32, #tpu.memory_space<vmem>>, %arg6: memref<64x128xbf16, #tpu.memory_space<vmem>>) attributes {dimension_semantics = [#tpu.dimension_semantics<parallel>, #tpu.dimension_semantics<arbitrary>], iteration_bounds = array<i64: 2, 1>, scalar_prefetch = 0 : i64, scratch_operands = 1 : i64, tpu.core_type = #tpu.core_type<tc>, window_params = [{transform_indices = @transform_0, window_bounds = array<i64: 1, 9, 9, 32>}, {pipeline_mode = #tpu.pipeline_mode<synchronous>, transform_indices = @transform_1, window_bounds = array<i64: 128, 128>}, {transform_indices = @transform_2, window_bounds = array<i64: 1, 1, 128>}, {transform_indices = @transform_3, window_bounds = array<i64: 1, 1, 128>}]} {
    %c8_i32 = arith.constant 8 : i32
    %0 = arith.muli %arg1, %c8_i32 : i32
    %1 = tpu.assume_multiple %0, 8 : i32
    %c0_i32 = arith.constant 0 : i32
    %2 = arith.addi %1, %c0_i32 : i32
    %c0 = arith.constant 0 : index
    %3 = arith.index_cast %2 : i32 to index
    %c0_0 = arith.constant 0 : index
    %c0_1 = arith.constant 0 : index
    %4 = vector.load %arg2[%c0, %3, %c0_0, %c0_1] : memref<1x9x9x32xbf16, #tpu.memory_space<vmem>>, vector<1x8x8x32xbf16>
    %5 = vector.shape_cast %4 : vector<1x8x8x32xbf16> to vector<8x8x32xbf16>
    %6 = vector.shape_cast %5 : vector<8x8x32xbf16> to vector<64x32xbf16>
    %c0_2 = arith.constant 0 : index
    %c0_3 = arith.constant 0 : index
    %7 = vector.load %arg6[%c0_2, %c0_3] : memref<64x128xbf16, #tpu.memory_space<vmem>>, vector<64x32xbf16>
    tpu.vector_store %arg6[%c0_2, %c0_3], %6 {strides = array<i32>} : memref<64x128xbf16, #tpu.memory_space<vmem>>, vector<64x32xbf16>,
    %c0_i32_4 = arith.constant 0 : i32
    %8 = arith.addi %1, %c0_i32_4 : i32
    %c0_5 = arith.constant 0 : index
    %9 = arith.index_cast %8 : i32 to index
    %c1 = arith.constant 1 : index
    %c0_6 = arith.constant 0 : index
    %10 = vector.load %arg2[%c0_5, %9, %c1, %c0_6] : memref<1x9x9x32xbf16, #tpu.memory_space<vmem>>, vector<1x8x8x32xbf16>
    %11 = vector.shape_cast %10 : vector<1x8x8x32xbf16> to vector<8x8x32xbf16>
    %12 = vector.shape_cast %11 : vector<8x8x32xbf16> to vector<64x32xbf16>
    %c0_7 = arith.constant 0 : index
    %c32 = arith.constant 32 : index
    %13 = vector.load %arg6[%c0_7, %c32] : memref<64x128xbf16, #tpu.memory_space<vmem>>, vector<64x32xbf16>
    tpu.vector_store %arg6[%c0_7, %c32], %12 {strides = array<i32>} : memref<64x128xbf16, #tpu.memory_space<vmem>>, vector<64x32xbf16>,
    %c1_i32 = arith.constant 1 : i32
    %14 = arith.addi %1, %c1_i32 : i32
    %c0_8 = arith.constant 0 : index
    %15 = arith.index_cast %14 : i32 to index
    %c0_9 = arith.constant 0 : index
    %c0_10 = arith.constant 0 : index
    %16 = vector.load %arg2[%c0_8, %15, %c0_9, %c0_10] : memref<1x9x9x32xbf16, #tpu.memory_space<vmem>>, vector<1x8x8x32xbf16>
    %17 = vector.shape_cast %16 : vector<1x8x8x32xbf16> to vector<8x8x32xbf16>
    %18 = vector.shape_cast %17 : vector<8x8x32xbf16> to vector<64x32xbf16>
    %c0_11 = arith.constant 0 : index
    %c64 = arith.constant 64 : index
    %19 = vector.load %arg6[%c0_11, %c64] : memref<64x128xbf16, #tpu.memory_space<vmem>>, vector<64x32xbf16>
    tpu.vector_store %arg6[%c0_11, %c64], %18 {strides = array<i32>} : memref<64x128xbf16, #tpu.memory_space<vmem>>, vector<64x32xbf16>,
    %c1_i32_12 = arith.constant 1 : i32
    %20 = arith.addi %1, %c1_i32_12 : i32
    %c0_13 = arith.constant 0 : index
    %21 = arith.index_cast %20 : i32 to index
    %c1_14 = arith.constant 1 : index
    %c0_15 = arith.constant 0 : index
    %22 = vector.load %arg2[%c0_13, %21, %c1_14, %c0_15] : memref<1x9x9x32xbf16, #tpu.memory_space<vmem>>, vector<1x8x8x32xbf16>
    %23 = vector.shape_cast %22 : vector<1x8x8x32xbf16> to vector<8x8x32xbf16>
    %24 = vector.shape_cast %23 : vector<8x8x32xbf16> to vector<64x32xbf16>
    %c0_16 = arith.constant 0 : index
    %c96 = arith.constant 96 : index
    %25 = vector.load %arg6[%c0_16, %c96] : memref<64x128xbf16, #tpu.memory_space<vmem>>, vector<64x32xbf16>
    tpu.vector_store %arg6[%c0_16, %c96], %24 {strides = array<i32>} : memref<64x128xbf16, #tpu.memory_space<vmem>>, vector<64x32xbf16>,
    %c0_17 = arith.constant 0 : index
    %c0_18 = arith.constant 0 : index
    %26 = vector.load %arg6[%c0_17, %c0_18] : memref<64x128xbf16, #tpu.memory_space<vmem>>, vector<64x128xbf16>
    %c0_19 = arith.constant 0 : index
    %c0_20 = arith.constant 0 : index
    %27 = vector.load %arg3[%c0_19, %c0_20] : memref<128x128xbf16, #tpu.memory_space<vmem>>, vector<128x128xbf16>
    %cst = arith.constant dense<0.000000e+00> : vector<64x128xf32>
    %28 = tpu.matmul %26, %27, %cst {dimension_numbers = #tpu.dot_dimension_numbers<[1], [0], [0], [1], [0, 0, 1, 1], [], []>} : vector<64x128xbf16>, vector<128x128xbf16>, vector<64x128xf32> -> vector<64x128xf32>
    %cst_21 = arith.constant dense<0.000000e+00> : vector<128xf32>
    %29 = vector.multi_reduction <add>, %28, %cst_21 [0] : vector<64x128xf32> to vector<128xf32>
    %30 = vector.shape_cast %29 : vector<128xf32> to vector<1x128xf32>
    %cst_22 = arith.constant 6.400000e+01 : f32
    %31 = vector.broadcast %cst_22 : f32 to vector<1x128xf32>
    %32 = arith.divf %30, %31 : vector<1x128xf32>
    %33 = vector.broadcast %32 : vector<1x128xf32> to vector<64x128xf32>
    %34 = arith.subf %28, %33 : vector<64x128xf32>
    %35 = arith.mulf %34, %34 : vector<64x128xf32>
    %cst_23 = arith.constant dense<0.000000e+00> : vector<128xf32>
    %36 = vector.multi_reduction <add>, %35, %cst_23 [0] : vector<64x128xf32> to vector<128xf32>
    %37 = vector.shape_cast %36 : vector<128xf32> to vector<1x128xf32>
    %c0_i32_24 = arith.constant 0 : i32
    %38 = arith.cmpi eq, %arg1, %c0_i32_24 : i32
    %39 = arith.extui %38 : i1 to i32
    %c0_i32_25 = arith.constant 0 : i32
    %40 = arith.cmpi ne, %39, %c0_i32_25 : i32
    scf.if %40 {
      %c0_28 = arith.constant 0 : index
      %c0_29 = arith.constant 0 : index
      %c0_30 = arith.constant 0 : index
      %44 = vector.load %arg4[%c0_28, %c0_29, %c0_30] : memref<1x1x128xf32, #tpu.memory_space<vmem>>, vector<1x1x128xf32>
      %45 = vector.shape_cast %44 : vector<1x1x128xf32> to vector<1x128xf32>
      %46 = vector.shape_cast %32 : vector<1x128xf32> to vector<1x1x128xf32>
      tpu.vector_store %arg4[%c0_28, %c0_29, %c0_30], %46 {strides = array<i32>} : memref<1x1x128xf32, #tpu.memory_space<vmem>>, vector<1x1x128xf32>,
      %c0_31 = arith.constant 0 : index
      %c0_32 = arith.constant 0 : index
      %c0_33 = arith.constant 0 : index
      %47 = vector.load %arg5[%c0_31, %c0_32, %c0_33] : memref<1x1x128xf32, #tpu.memory_space<vmem>>, vector<1x1x128xf32>
      %48 = vector.shape_cast %47 : vector<1x1x128xf32> to vector<1x128xf32>
      %49 = vector.shape_cast %37 : vector<1x128xf32> to vector<1x1x128xf32>
      tpu.vector_store %arg5[%c0_31, %c0_32, %c0_33], %49 {strides = array<i32>} : memref<1x1x128xf32, #tpu.memory_space<vmem>>, vector<1x1x128xf32>,
    } else {
    }
    %c0_i32_26 = arith.constant 0 : i32
    %41 = arith.cmpi sgt, %arg1, %c0_i32_26 : i32
    %42 = arith.extui %41 : i1 to i32
    %c0_i32_27 = arith.constant 0 : i32
    %43 = arith.cmpi ne, %42, %c0_i32_27 : i32
    scf.if %43 {
      %44 = arith.sitofp %arg1 : i32 to f32
      %c0_28 = arith.constant 0 : index
      %c0_29 = arith.constant 0 : index
      %c0_30 = arith.constant 0 : index
      %45 = vector.load %arg4[%c0_28, %c0_29, %c0_30] : memref<1x1x128xf32, #tpu.memory_space<vmem>>, vector<1x1x128xf32>
      %46 = vector.shape_cast %45 : vector<1x1x128xf32> to vector<1x128xf32>
      %47 = arith.subf %32, %46 : vector<1x128xf32>
      %c0_31 = arith.constant 0 : index
      %c0_32 = arith.constant 0 : index
      %c0_33 = arith.constant 0 : index
      %48 = vector.load %arg4[%c0_31, %c0_32, %c0_33] : memref<1x1x128xf32, #tpu.memory_space<vmem>>, vector<1x1x128xf32>
      %49 = vector.shape_cast %48 : vector<1x1x128xf32> to vector<1x128xf32>
      %cst_34 = arith.constant 1.000000e+00 : f32
      %50 = arith.addf %44, %cst_34 : f32
      %51 = vector.broadcast %50 : f32 to vector<1x128xf32>
      %52 = arith.divf %47, %51 : vector<1x128xf32>
      %53 = arith.addf %49, %52 : vector<1x128xf32>
      %c0_35 = arith.constant 0 : index
      %c0_36 = arith.constant 0 : index
      %c0_37 = arith.constant 0 : index
      %54 = vector.load %arg4[%c0_35, %c0_36, %c0_37] : memref<1x1x128xf32, #tpu.memory_space<vmem>>, vector<1x1x128xf32>
      %55 = vector.shape_cast %54 : vector<1x1x128xf32> to vector<1x128xf32>
      %56 = vector.shape_cast %53 : vector<1x128xf32> to vector<1x1x128xf32>
      tpu.vector_store %arg4[%c0_35, %c0_36, %c0_37], %56 {strides = array<i32>} : memref<1x1x128xf32, #tpu.memory_space<vmem>>, vector<1x1x128xf32>,
      %c0_38 = arith.constant 0 : index
      %c0_39 = arith.constant 0 : index
      %c0_40 = arith.constant 0 : index
      %57 = vector.load %arg5[%c0_38, %c0_39, %c0_40] : memref<1x1x128xf32, #tpu.memory_space<vmem>>, vector<1x1x128xf32>
      %58 = vector.shape_cast %57 : vector<1x1x128xf32> to vector<1x128xf32>
      %59 = arith.addf %58, %37 : vector<1x128xf32>
      %60 = arith.mulf %47, %47 : vector<1x128xf32>
      %cst_41 = arith.constant 6.400000e+01 : f32
      %61 = arith.mulf %cst_41, %44 : f32
      %cst_42 = arith.constant 1.000000e+00 : f32
      %62 = arith.addf %44, %cst_42 : f32
      %63 = arith.divf %61, %62 : f32
      %64 = vector.broadcast %63 : f32 to vector<1x128xf32>
      %65 = arith.mulf %60, %64 : vector<1x128xf32>
      %66 = arith.addf %59, %65 : vector<1x128xf32>
      %c0_43 = arith.constant 0 : index
      %c0_44 = arith.constant 0 : index
      %c0_45 = arith.constant 0 : index
      %67 = vector.load %arg5[%c0_43, %c0_44, %c0_45] : memref<1x1x128xf32, #tpu.memory_space<vmem>>, vector<1x1x128xf32>
      %68 = vector.shape_cast %67 : vector<1x1x128xf32> to vector<1x128xf32>
      %69 = vector.shape_cast %66 : vector<1x128xf32> to vector<1x1x128xf32>
      tpu.vector_store %arg5[%c0_43, %c0_44, %c0_45], %69 {strides = array<i32>} : memref<1x1x128xf32, #tpu.memory_space<vmem>>, vector<1x1x128xf32>,
    } else {
    }
    return
  }
  func.func @transform_0(%arg0: i32, %arg1: i32) -> (i32, i32, i32, i32) {
    %c0_i32 = arith.constant 0 : i32
    %c0_i32_0 = arith.constant 0 : i32
    %c0_i32_1 = arith.constant 0 : i32
    %c0_i32_2 = arith.constant 0 : i32
    return %arg0, %c0_i32, %c0_i32_0, %c0_i32_1 : i32, i32, i32, i32
  }
  func.func @transform_1(%arg0: i32, %arg1: i32) -> (i32, i32) {
    %c0_i32 = arith.constant 0 : i32
    %c0_i32_0 = arith.constant 0 : i32
    %c0_i32_1 = arith.constant 0 : i32
    return %c0_i32, %c0_i32_0 : i32, i32
  }
  func.func @transform_2(%arg0: i32, %arg1: i32) -> (i32, i32, i32) {
    %c0_i32 = arith.constant 0 : i32
    %c0_i32_0 = arith.constant 0 : i32
    %c0_i32_1 = arith.constant 0 : i32
    return %arg0, %c0_i32, %c0_i32_0 : i32, i32, i32
  }
  func.func @transform_3(%arg0: i32, %arg1: i32) -> (i32, i32, i32) {
    %c0_i32 = arith.constant 0 : i32
    %c0_i32_0 = arith.constant 0 : i32
    %c0_i32_1 = arith.constant 0 : i32
    return %arg0, %c0_i32, %c0_i32_0 : i32, i32, i32
  }
}

</mosaic_0001>

<llo_original>
// kernel: tpu_custom_call.1
$region0: #{tpu_custom_call.1}
  #allocation0 [shape = 'u32[]', space=smem, size = 0x4, offset = 0x4, fixed_abs, tag = 'smem constant byte address 0x4 - core index']
  #allocation1 [shape = 'u32[144,128]{1,0:T(1,128)}', space=vmem, size = 0x12000, scoped, tag = 'internal scratch']
  #allocation2 [shape = 'bf16[64,128]{1,0:T(8,128)(2,1)}', space=vmem, size = 0x4000, scoped, tag = 'scratch operand']
  %s0 = inlined_call_operand.vmem [shape: bf16[2,9,9,32], index: 0, kind: input, shape index: {}]
  %s1 = inlined_call_operand.vmem [shape: bf16[128,128], index: 1, kind: input, shape index: {}]
  %s2 = inlined_call_operand.hbm [shape: f32[2,1,128], index: 2, kind: output, shape index: {0}]
  %s3 = inlined_call_operand.hbm [shape: f32[2,1,128], index: 3, kind: output, shape index: {1}]
  %4 = xla_tuple %s2, %s3
  %s5 = sld [smem:[#allocation0]]
  $region57: #{tpu_custom_call.1} parent=0
    _
  %s7 = ssub.s32 1, %s5
  %s8 = scalar_select 0, %s7, %s5
  $region1: #{tpu_custom_call.1} parent=0
    #allocation3 [shape = 'u8[1024]{0}', space=vmem, size = 0x400, scoped, tag = 'output window, operand 0']
    #allocation4 [shape = 's32[2]{0}', space=sflag, size = 0x8, scoped, tag = 'scoped memory for tpu_custom_call.1']
    #allocation5 [shape = 'u8[1024]{0}', space=vmem, size = 0x400, scoped, tag = 'output window, operand 1']
    #allocation6 [shape = 's32[2]{0}', space=sflag, size = 0x8, scoped, tag = 'scoped memory for tpu_custom_call.1']
    %9 = vsyncpa [#allocation4], 0
    %s10 = scalar_lea.sflag [#allocation4], 1
    %11 = vsyncpa %s10, 0
    %12 = vsyncpa [#allocation6], 0
    %s13 = scalar_lea.sflag [#allocation6], 1
    %14 = vsyncpa %s13, 0
    loop: start=0, step=1, limit=4
    $region2: #{tpu_custom_call.1} parent=1 // loop_pre_header
      _
    $region3: #{tpu_custom_call.1} parent=1 // loop_header
      %s16 = sphi 0, %s20
      %p17 = scmp.ge.s32.totalorder %s16, 4
      %s23 = sphi 0, %s35
      %s24 = sphi 0, %s31
      %s25 = sphi 0, %s23
      %s26 = sphi 0, %s24
      %s27 = sphi 0, %s25
      %s28 = sphi 0, %s26
      %s38 = sphi 0, %s40
      %s41 = sphi 0, %s38
      %s42 = sphi 0, %s41
      %s58 = sphi 0, %s42
      %s62 = sphi 0, %s62
      %s64 = sphi 0, %s62
      %s65 = sphi 0, %s64
      %s79 = sphi 0, %s65
      %s85 = sphi 0, %s87
      %s88 = sphi 0, %s85
      %s89 = sphi 0, %s88
      %s105 = sphi 0, %s89
      %s111 = sphi 0, %s113
      %s114 = sphi 0, %s111
      %s115 = sphi 0, %s114
      %s131 = sphi 0, %s115
    $region4: #{tpu_custom_call.1} parent=1 // loop_header_branch
      %19 = sbr.rel (%p17) target = $region8
    $region5: #{tpu_custom_call.1} parent=1 // loop_body
      %s21 = ssub.s32 %s16, 1
      %s22 = ssub.s32 %s16, 2
      %s29 = sadd.s32 1, %s24
      %p30 = scmp.ge.s32.totalorder %s29, 1
      %s31 = scalar_select %p30, 0, %s29
      %s32 = sadd.s32 1, %s23
      %s33 = scalar_select %p30, %s32, %s23
      %p34 = scmp.ge.s32.totalorder %s33, 2
      %s35 = scalar_select %p34, 0, %s33
      %s36 = ssub.s32 %s23, %s35
      %p37 = scmp.eq.s32.totalorder %s36, 0
      %s39 = sadd.s32 %s38, 1
      %s40 = scalar_select %p37, %s38, %s39
      %p43 = pneg %p37
      %p44 = scmp.eq.s32.totalorder %s16, 1
      %p45 = por %p43, %p44
      %p46 = scmp.ne.s32.totalorder %s38, %s41
      %p47 = scmp.eq.s32.totalorder %s16, 0
      %p48 = por %p46, %p47
      %p49 = scmp.ne.s32.totalorder %s38, %s41
      %p50 = scmp.eq.s32.totalorder %s21, 1
      %p51 = por %p49, %p50
      %p52 = scmp.ne.s32.totalorder %s41, %s42
      %p53 = scmp.eq.s32.totalorder %s21, 0
      %p54 = por %p52, %p53
      %p55 = scmp.ne.s32.totalorder %s41, %s42
      %p56 = scmp.eq.s32.totalorder %s22, 1
      %p57 = por %p55, %p56
      %p59 = scmp.ne.s32.totalorder %s42, %s58
      %p60 = scmp.eq.s32.totalorder %s22, 0
      %p61 = por %p59, %p60
      %s63 = sadd.s32 %s62, 1
      %p66 = scmp.eq.s32.totalorder %s16, 1
      %p67 = scmp.ne.s32.totalorder %s62, %s64
      %p68 = scmp.eq.s32.totalorder %s16, 0
      %p69 = por %p67, %p68
      %p70 = scmp.ne.s32.totalorder %s62, %s64
      %p71 = scmp.eq.s32.totalorder %s21, 1
      %p72 = por %p70, %p71
      %p73 = scmp.ne.s32.totalorder %s64, %s65
      %p74 = scmp.eq.s32.totalorder %s21, 0
      %p75 = por %p73, %p74
      %p76 = scmp.ne.s32.totalorder %s64, %s65
      %p77 = scmp.eq.s32.totalorder %s22, 1
      %p78 = por %p76, %p77
      %p80 = scmp.ne.s32.totalorder %s65, %s79
      %p81 = scmp.eq.s32.totalorder %s22, 0
      %p82 = por %p80, %p81
      %s83 = ssub.s32 %s23, %s35
      %p84 = scmp.eq.s32.totalorder %s83, 0
      %s86 = sadd.s32 %s85, 1
      %s87 = scalar_select %p84, %s85, %s86
      %p90 = pneg %p84
      %p91 = scmp.eq.s32.totalorder %s16, 1
      %p92 = por %p90, %p91
      %p93 = scmp.ne.s32.totalorder %s85, %s88
      %p94 = scmp.eq.s32.totalorder %s16, 0
      %p95 = por %p93, %p94
      %p96 = scmp.ne.s32.totalorder %s85, %s88
      %p97 = scmp.eq.s32.totalorder %s21, 1
      %p98 = por %p96, %p97
      %p99 = scmp.ne.s32.totalorder %s88, %s89
      %p100 = scmp.eq.s32.totalorder %s21, 0
      %p101 = por %p99, %p100
      %p102 = scmp.ne.s32.totalorder %s88, %s89
      %p103 = scmp.eq.s32.totalorder %s22, 1
      %p104 = por %p102, %p103
      %p106 = scmp.ne.s32.totalorder %s89, %s105
      %p107 = scmp.eq.s32.totalorder %s22, 0
      %p108 = por %p106, %p107
      %s109 = ssub.s32 %s23, %s35
      %p110 = scmp.eq.s32.totalorder %s109, 0
      %s112 = sadd.s32 %s111, 1
      %s113 = scalar_select %p110, %s111, %s112
      %p116 = pneg %p110
      %p117 = scmp.eq.s32.totalorder %s16, 1
      %p118 = por %p116, %p117
      %p119 = scmp.ne.s32.totalorder %s111, %s114
      %p120 = scmp.eq.s32.totalorder %s16, 0
      %p121 = por %p119, %p120
      %p122 = scmp.ne.s32.totalorder %s111, %s114
      %p123 = scmp.eq.s32.totalorder %s21, 1
      %p124 = por %p122, %p123
      %p125 = scmp.ne.s32.totalorder %s114, %s115
      %p126 = scmp.eq.s32.totalorder %s21, 0
      %p127 = por %p125, %p126
      %p128 = scmp.ne.s32.totalorder %s114, %s115
      %p129 = scmp.eq.s32.totalorder %s22, 1
      %p130 = por %p128, %p129
      %p132 = scmp.ne.s32.totalorder %s115, %s131
      %p133 = scmp.eq.s32.totalorder %s22, 0
      %p134 = por %p132, %p133
      %p135 = scmp.le.s32.totalorder 1, %s16
      %p136 = scmp.lt.s32.totalorder %s16, 3
      %p137 = pnand %p135, %p136
      %p138 = pneg %p137
      // Predicated region
      $region9: #{tpu_custom_call.1} parent=5 // pred_check
        _
      $region10: #{tpu_custom_call.1} parent=5 // pred_check_branch
        %140 = sbr.rel (%p137) target = $region12
      $region11: #{tpu_custom_call.1} parent=5 // pred_region
        %s141 = ssub.s32 %s16, 1
        // Predicated region
        $region13: #{tpu_custom_call.1} parent=11 // pred_check
          %p142 = pneg %p75
        $region14: #{tpu_custom_call.1} parent=11 // pred_check_branch
          %144 = sbr.rel (%p142) target = $region16
        $region15: #{tpu_custom_call.1} parent=11 // pred_region
          _
        $region16: #{tpu_custom_call.1} parent=11 // pred_fallthru
          _
      $region12: #{tpu_custom_call.1} parent=5 // pred_fallthru
        _
      %p145 = scmp.lt.s32.totalorder %s16, 2
      // Predicated region
      $region17: #{tpu_custom_call.1} parent=5 // pred_check
        %p146 = pneg %p145
      $region18: #{tpu_custom_call.1} parent=5 // pred_check_branch
        %148 = sbr.rel (%p146) target = $region20
      $region19: #{tpu_custom_call.1} parent=5 // pred_region
        // Predicated region
        $region21: #{tpu_custom_call.1} parent=19 // pred_check
          %p149 = pneg %p48
        $region22: #{tpu_custom_call.1} parent=19 // pred_check_branch
          %151 = sbr.rel (%p149) target = $region24
        $region23: #{tpu_custom_call.1} parent=19 // pred_region
          %p152 = scmp.lt.s32.totalorder %s23, 1
          %s153 = scalar_select %p152, %s23, 1
          %s154 = smul.addr %s153, 18
          %s155 = smul.addr %s154, 4
          %s156 = scalar_lea.vmem %s0, %s155
        $region24: #{tpu_custom_call.1} parent=19 // pred_fallthru
          _
      $region20: #{tpu_custom_call.1} parent=5 // pred_fallthru
        _
      %p157 = scmp.le.s32.totalorder 1, %s16
      %p158 = scmp.lt.s32.totalorder %s16, 3
      %p159 = pnand %p157, %p158
      %p160 = pneg %p159
      // Predicated region
      $region25: #{tpu_custom_call.1} parent=5 // pred_check
        _
      $region26: #{tpu_custom_call.1} parent=5 // pred_check_branch
        %162 = sbr.rel (%p159) target = $region28
      $region27: #{tpu_custom_call.1} parent=5 // pred_region
        %s163 = ssub.s32 %s16, 1
        %p164 = scmp.lt.s32.totalorder %s25, 1
        %s165 = scalar_select %p164, %s25, 1
        %s166 = smul.addr %s165, 18
        %s167 = smul.addr %s166, 4
        %s168 = scalar_lea.vmem %s0, %s167
        %p169 = pneg %p54
        %p170 = pneg %p51
        %p171 = pneg %p75
        %p172 = pneg %p72
        %p173 = pneg %p101
        %p174 = pneg %p98
        %s175 = sand.u32 %s88, 1
        %s176 = scalar_lea.sflag [#allocation4], %s175
        %s177 = sand.u32 %s88, 1
        %s178 = scalar_lea.vmem [#allocation3], %s177
        %p179 = pneg %p127
        %p180 = pneg %p124
        %s181 = sand.u32 %s114, 1
        %s182 = scalar_lea.sflag [#allocation6], %s181
        %s183 = sand.u32 %s114, 1
        %s184 = scalar_lea.vmem [#allocation5], %s183
        %p185 = scmp.lt.s32.totalorder %s25, 1
        %s186 = scalar_select %p185, %s25, 1
        %s187 = smul.addr %s186, 18
        %s188 = smul.addr %s187, 4
        %s189 = scalar_lea.vmem %s0, %s188
        %s191 = smul.u32 %s26, 8
        %s192 = smul.u32 %s191, 2
        %s193 = smul.addr %s192, 4
        %s194 = scalar_lea.vmem %s189, %s193
        %v195 = vld [vmem:[%s194] sm:$0xf]
        %v196 = vld [vmem:[%s194 + $0x8] sm:$0xf]
        %v197 = vld [vmem:[%s194 + $0x10] sm:$0xf]
        %v198 = vld [vmem:[%s194 + $0x18] sm:$0xf]
        %v199 = vld [vmem:[%s194 + $0x20] sm:$0xf]
        %v200 = vld [vmem:[%s194 + $0x28] sm:$0xf]
        %v201 = vld [vmem:[%s194 + $0x30] sm:$0xf]
        %v202 = vld [vmem:[%s194 + $0x38] sm:$0xf]
        %vm203 = vcmask 257024
        %204 = vst.msk [vmem:[#allocation2] sm:$0xf] %vm203, %v195
        %205 = vst.msk [vmem:[#allocation2 + $0x4] sm:$0xf] %vm203, %v196
        %206 = vst.msk [vmem:[#allocation2 + $0x8] sm:$0xf] %vm203, %v197
        %207 = vst.msk [vmem:[#allocation2 + $0xc] sm:$0xf] %vm203, %v198
        %208 = vst.msk [vmem:[#allocation2 + $0x10] sm:$0xf] %vm203, %v199
        %209 = vst.msk [vmem:[#allocation2 + $0x14] sm:$0xf] %vm203, %v200
        %210 = vst.msk [vmem:[#allocation2 + $0x18] sm:$0xf] %vm203, %v201
        %211 = vst.msk [vmem:[#allocation2 + $0x1c] sm:$0xf] %vm203, %v202
        %v212 = vld [vmem:[%s194] sm:$0xf]
        %v213 = vld [vmem:[%s194 + $0x4] sm:$0x1]
        %v214 = vld [vmem:[%s194 + $0x8] sm:$0xf]
        %v215 = vld [vmem:[%s194 + $0xc] sm:$0x1]
        %v216 = vld [vmem:[%s194 + $0x10] sm:$0xf]
        %v217 = vld [vmem:[%s194 + $0x14] sm:$0x1]
        %v218 = vld [vmem:[%s194 + $0x18] sm:$0xf]
        %v219 = vld [vmem:[%s194 + $0x1c] sm:$0x1]
        %v220 = vld [vmem:[%s194 + $0x20] sm:$0xf]
        %v221 = vld [vmem:[%s194 + $0x24] sm:$0x1]
        %v222 = vld [vmem:[%s194 + $0x28] sm:$0xf]
        %v223 = vld [vmem:[%s194 + $0x2c] sm:$0x1]
        %v224 = vld [vmem:[%s194 + $0x30] sm:$0xf]
        %v225 = vld [vmem:[%s194 + $0x34] sm:$0x1]
        %v226 = vld [vmem:[%s194 + $0x38] sm:$0xf]
        %v227 = vld [vmem:[%s194 + $0x3c] sm:$0x1]
        %vm228 = vsmask.f32 3328
        %vm229 = vsmask.f32 7440
        %vm230 = vmor %vm228, %vm229
        %v232 = vshrl.u32 %v212, 16
        %v234 = vrot.slane %v232, 4
        %v235 = vshll.u32 %v212, 16
        %v237 = vrot.slane %v235, 5
        %v238 = vor.u32 %v234, %v237
        %v239 = vrot.slane %v238, 4
        %v241 = vshll.u32 %v213, 16
        %v243 = vrot.slane %v241, 5
        %v244 = vsel %vm230, %v239, %v243
        %v246 = vshrl.u32 %v214, 16
        %v248 = vrot.slane %v246, 4
        %v249 = vshll.u32 %v214, 16
        %v251 = vrot.slane %v249, 5
        %v252 = vor.u32 %v248, %v251
        %v253 = vrot.slane %v252, 4
        %v255 = vshll.u32 %v215, 16
        %v257 = vrot.slane %v255, 5
        %v258 = vsel %vm230, %v253, %v257
        %v260 = vshrl.u32 %v216, 16
        %v262 = vrot.slane %v260, 4
        %v263 = vshll.u32 %v216, 16
        %v265 = vrot.slane %v263, 5
        %v266 = vor.u32 %v262, %v265
        %v267 = vrot.slane %v266, 4
        %v269 = vshll.u32 %v217, 16
        %v271 = vrot.slane %v269, 5
        %v272 = vsel %vm230, %v267, %v271
        %v274 = vshrl.u32 %v218, 16
        %v276 = vrot.slane %v274, 4
        %v277 = vshll.u32 %v218, 16
        %v279 = vrot.slane %v277, 5
        %v280 = vor.u32 %v276, %v279
        %v281 = vrot.slane %v280, 4
        %v283 = vshll.u32 %v219, 16
        %v285 = vrot.slane %v283, 5
        %v286 = vsel %vm230, %v281, %v285
        %v288 = vshrl.u32 %v220, 16
        %v290 = vrot.slane %v288, 4
        %v291 = vshll.u32 %v220, 16
        %v293 = vrot.slane %v291, 5
        %v294 = vor.u32 %v290, %v293
        %v295 = vrot.slane %v294, 4
        %v297 = vshll.u32 %v221, 16
        %v299 = vrot.slane %v297, 5
        %v300 = vsel %vm230, %v295, %v299
        %v302 = vshrl.u32 %v222, 16
        %v304 = vrot.slane %v302, 4
        %v305 = vshll.u32 %v222, 16
        %v307 = vrot.slane %v305, 5
        %v308 = vor.u32 %v304, %v307
        %v309 = vrot.slane %v308, 4
        %v311 = vshll.u32 %v223, 16
        %v313 = vrot.slane %v311, 5
        %v314 = vsel %vm230, %v309, %v313
        %v316 = vshrl.u32 %v224, 16
        %v318 = vrot.slane %v316, 4
        %v319 = vshll.u32 %v224, 16
        %v321 = vrot.slane %v319, 5
        %v322 = vor.u32 %v318, %v321
        %v323 = vrot.slane %v322, 4
        %v325 = vshll.u32 %v225, 16
        %v327 = vrot.slane %v325, 5
        %v328 = vsel %vm230, %v323, %v327
        %v330 = vshrl.u32 %v226, 16
        %v332 = vrot.slane %v330, 4
        %v333 = vshll.u32 %v226, 16
        %v335 = vrot.slane %v333, 5
        %v336 = vor.u32 %v332, %v335
        %v337 = vrot.slane %v336, 4
        %v339 = vshll.u32 %v227, 16
        %v341 = vrot.slane %v339, 5
        %v342 = vsel %vm230, %v337, %v341
        %343 = vrot.lane.b32.xlu0 %v244, 32
        %v344 = vpop.permute.xlu0 %343
        %345 = vrot.lane.b32.xlu0 %v258, 32
        %v346 = vpop.permute.xlu0 %345
        %347 = vrot.lane.b32.xlu0 %v272, 32
        %v348 = vpop.permute.xlu0 %347
        %349 = vrot.lane.b32.xlu0 %v286, 32
        %v350 = vpop.permute.xlu0 %349
        %351 = vrot.lane.b32.xlu0 %v300, 32
        %v352 = vpop.permute.xlu0 %351
        %353 = vrot.lane.b32.xlu0 %v314, 32
        %v354 = vpop.permute.xlu0 %353
        %355 = vrot.lane.b32.xlu0 %v328, 32
        %v356 = vpop.permute.xlu0 %355
        %357 = vrot.lane.b32.xlu0 %v342, 32
        %v358 = vpop.permute.xlu0 %357
        %vm367 = vcmask 519424
        %368 = vst.msk [vmem:[#allocation2] sm:$0xf] %vm367, %v344
        %369 = vst.msk [vmem:[#allocation2 + $0x4] sm:$0xf] %vm367, %v346
        %370 = vst.msk [vmem:[#allocation2 + $0x8] sm:$0xf] %vm367, %v348
        %371 = vst.msk [vmem:[#allocation2 + $0xc] sm:$0xf] %vm367, %v350
        %372 = vst.msk [vmem:[#allocation2 + $0x10] sm:$0xf] %vm367, %v352
        %373 = vst.msk [vmem:[#allocation2 + $0x14] sm:$0xf] %vm367, %v354
        %374 = vst.msk [vmem:[#allocation2 + $0x18] sm:$0xf] %vm367, %v356
        %375 = vst.msk [vmem:[#allocation2 + $0x1c] sm:$0xf] %vm367, %v358
        %s376 = sadd.s32 %s191, 1
        %s377 = smul.u32 %s376, 2
        %s378 = smul.addr %s377, 4
        %s379 = scalar_lea.vmem %s189, %s378
        %v380 = vld [vmem:[%s379] sm:$0xf]
        %v381 = vld [vmem:[%s379 + $0x8] sm:$0xf]
        %v382 = vld [vmem:[%s379 + $0x10] sm:$0xf]
        %v383 = vld [vmem:[%s379 + $0x18] sm:$0xf]
        %v384 = vld [vmem:[%s379 + $0x20] sm:$0xf]
        %v385 = vld [vmem:[%s379 + $0x28] sm:$0xf]
        %v386 = vld [vmem:[%s379 + $0x30] sm:$0xf]
        %v387 = vld [vmem:[%s379 + $0x38] sm:$0xf]
        %396 = vrot.lane.b32.xlu0 %v380, 64
        %v397 = vpop.permute.xlu0 %396
        %398 = vrot.lane.b32.xlu0 %v381, 64
        %v399 = vpop.permute.xlu0 %398
        %400 = vrot.lane.b32.xlu0 %v382, 64
        %v401 = vpop.permute.xlu0 %400
        %402 = vrot.lane.b32.xlu0 %v383, 64
        %v403 = vpop.permute.xlu0 %402
        %404 = vrot.lane.b32.xlu0 %v384, 64
        %v405 = vpop.permute.xlu0 %404
        %406 = vrot.lane.b32.xlu0 %v385, 64
        %v407 = vpop.permute.xlu0 %406
        %408 = vrot.lane.b32.xlu0 %v386, 64
        %v409 = vpop.permute.xlu0 %408
        %410 = vrot.lane.b32.xlu0 %v387, 64
        %v411 = vpop.permute.xlu0 %410
        %vm420 = vcmask 781824
        %421 = vst.msk [vmem:[#allocation2] sm:$0xf] %vm420, %v397
        %422 = vst.msk [vmem:[#allocation2 + $0x4] sm:$0xf] %vm420, %v399
        %423 = vst.msk [vmem:[#allocation2 + $0x8] sm:$0xf] %vm420, %v401
        %424 = vst.msk [vmem:[#allocation2 + $0xc] sm:$0xf] %vm420, %v403
        %425 = vst.msk [vmem:[#allocation2 + $0x10] sm:$0xf] %vm420, %v405
        %426 = vst.msk [vmem:[#allocation2 + $0x14] sm:$0xf] %vm420, %v407
        %427 = vst.msk [vmem:[#allocation2 + $0x18] sm:$0xf] %vm420, %v409
        %428 = vst.msk [vmem:[#allocation2 + $0x1c] sm:$0xf] %vm420, %v411
        %v429 = vld [vmem:[%s379] sm:$0xf]
        %v430 = vld [vmem:[%s379 + $0x4] sm:$0x1]
        %v431 = vld [vmem:[%s379 + $0x8] sm:$0xf]
        %v432 = vld [vmem:[%s379 + $0xc] sm:$0x1]
        %v433 = vld [vmem:[%s379 + $0x10] sm:$0xf]
        %v434 = vld [vmem:[%s379 + $0x14] sm:$0x1]
        %v435 = vld [vmem:[%s379 + $0x18] sm:$0xf]
        %v436 = vld [vmem:[%s379 + $0x1c] sm:$0x1]
        %v437 = vld [vmem:[%s379 + $0x20] sm:$0xf]
        %v438 = vld [vmem:[%s379 + $0x24] sm:$0x1]
        %v439 = vld [vmem:[%s379 + $0x28] sm:$0xf]
        %v440 = vld [vmem:[%s379 + $0x2c] sm:$0x1]
        %v441 = vld [vmem:[%s379 + $0x30] sm:$0xf]
        %v442 = vld [vmem:[%s379 + $0x34] sm:$0x1]
        %v443 = vld [vmem:[%s379 + $0x38] sm:$0xf]
        %v444 = vld [vmem:[%s379 + $0x3c] sm:$0x1]
        %v446 = vshrl.u32 %v429, 16
        %v448 = vrot.slane %v446, 4
        %v449 = vshll.u32 %v429, 16
        %v451 = vrot.slane %v449, 5
        %v452 = vor.u32 %v448, %v451
        %v453 = vrot.slane %v452, 4
        %v455 = vshll.u32 %v430, 16
        %v457 = vrot.slane %v455, 5
        %v458 = vsel %vm230, %v453, %v457
        %v460 = vshrl.u32 %v431, 16
        %v462 = vrot.slane %v460, 4
        %v463 = vshll.u32 %v431, 16
        %v465 = vrot.slane %v463, 5
        %v466 = vor.u32 %v462, %v465
        %v467 = vrot.slane %v466, 4
        %v469 = vshll.u32 %v432, 16
        %v471 = vrot.slane %v469, 5
        %v472 = vsel %vm230, %v467, %v471
        %v474 = vshrl.u32 %v433, 16
        %v476 = vrot.slane %v474, 4
        %v477 = vshll.u32 %v433, 16
        %v479 = vrot.slane %v477, 5
        %v480 = vor.u32 %v476, %v479
        %v481 = vrot.slane %v480, 4
        %v483 = vshll.u32 %v434, 16
        %v485 = vrot.slane %v483, 5
        %v486 = vsel %vm230, %v481, %v485
        %v488 = vshrl.u32 %v435, 16
        %v490 = vrot.slane %v488, 4
        %v491 = vshll.u32 %v435, 16
        %v493 = vrot.slane %v491, 5
        %v494 = vor.u32 %v490, %v493
        %v495 = vrot.slane %v494, 4
        %v497 = vshll.u32 %v436, 16
        %v499 = vrot.slane %v497, 5
        %v500 = vsel %vm230, %v495, %v499
        %v502 = vshrl.u32 %v437, 16
        %v504 = vrot.slane %v502, 4
        %v505 = vshll.u32 %v437, 16
        %v507 = vrot.slane %v505, 5
        %v508 = vor.u32 %v504, %v507
        %v509 = vrot.slane %v508, 4
        %v511 = vshll.u32 %v438, 16
        %v513 = vrot.slane %v511, 5
        %v514 = vsel %vm230, %v509, %v513
        %v516 = vshrl.u32 %v439, 16
        %v518 = vrot.slane %v516, 4
        %v519 = vshll.u32 %v439, 16
        %v521 = vrot.slane %v519, 5
        %v522 = vor.u32 %v518, %v521
        %v523 = vrot.slane %v522, 4
        %v525 = vshll.u32 %v440, 16
        %v527 = vrot.slane %v525, 5
        %v528 = vsel %vm230, %v523, %v527
        %v530 = vshrl.u32 %v441, 16
        %v532 = vrot.slane %v530, 4
        %v533 = vshll.u32 %v441, 16
        %v535 = vrot.slane %v533, 5
        %v536 = vor.u32 %v532, %v535
        %v537 = vrot.slane %v536, 4
        %v539 = vshll.u32 %v442, 16
        %v541 = vrot.slane %v539, 5
        %v542 = vsel %vm230, %v537, %v541
        %v544 = vshrl.u32 %v443, 16
        %v546 = vrot.slane %v544, 4
        %v547 = vshll.u32 %v443, 16
        %v549 = vrot.slane %v547, 5
        %v550 = vor.u32 %v546, %v549
        %v551 = vrot.slane %v550, 4
        %v553 = vshll.u32 %v444, 16
        %v555 = vrot.slane %v553, 5
        %v556 = vsel %vm230, %v551, %v555
        %557 = vrot.lane.b32.xlu0 %v458, 96
        %v558 = vpop.permute.xlu0 %557
        %559 = vrot.lane.b32.xlu0 %v472, 96
        %v560 = vpop.permute.xlu0 %559
        %561 = vrot.lane.b32.xlu0 %v486, 96
        %v562 = vpop.permute.xlu0 %561
        %563 = vrot.lane.b32.xlu0 %v500, 96
        %v564 = vpop.permute.xlu0 %563
        %565 = vrot.lane.b32.xlu0 %v514, 96
        %v566 = vpop.permute.xlu0 %565
        %567 = vrot.lane.b32.xlu0 %v528, 96
        %v568 = vpop.permute.xlu0 %567
        %569 = vrot.lane.b32.xlu0 %v542, 96
        %v570 = vpop.permute.xlu0 %569
        %571 = vrot.lane.b32.xlu0 %v556, 96
        %v572 = vpop.permute.xlu0 %571
        %vm581 = vcmask 1044224
        %582 = vst.msk [vmem:[#allocation2] sm:$0xf] %vm581, %v558
        %583 = vst.msk [vmem:[#allocation2 + $0x4] sm:$0xf] %vm581, %v560
        %584 = vst.msk [vmem:[#allocation2 + $0x8] sm:$0xf] %vm581, %v562
        %585 = vst.msk [vmem:[#allocation2 + $0xc] sm:$0xf] %vm581, %v564
        %586 = vst.msk [vmem:[#allocation2 + $0x10] sm:$0xf] %vm581, %v566
        %587 = vst.msk [vmem:[#allocation2 + $0x14] sm:$0xf] %vm581, %v568
        %588 = vst.msk [vmem:[#allocation2 + $0x18] sm:$0xf] %vm581, %v570
        %589 = vst.msk [vmem:[#allocation2 + $0x1c] sm:$0xf] %vm581, %v572
        %v590 = vld [vmem:[#allocation2] sm:$0xf]
        %v591 = vld [vmem:[#allocation2 + $0x4] sm:$0xf]
        %v592 = vld [vmem:[#allocation2 + $0x8] sm:$0xf]
        %v593 = vld [vmem:[#allocation2 + $0xc] sm:$0xf]
        %v594 = vld [vmem:[#allocation2 + $0x10] sm:$0xf]
        %v595 = vld [vmem:[#allocation2 + $0x14] sm:$0xf]
        %v596 = vld [vmem:[#allocation2 + $0x18] sm:$0xf]
        %v597 = vld [vmem:[#allocation2 + $0x1c] sm:$0xf]
        %v598 = vld [vmem:[%s1] sm:$0xf]
        %v599 = vld [vmem:[%s1 + $0x4] sm:$0xf]
        %v600 = vld [vmem:[%s1 + $0x8] sm:$0xf]
        %v601 = vld [vmem:[%s1 + $0xc] sm:$0xf]
        %v602 = vld [vmem:[%s1 + $0x10] sm:$0xf]
        %v603 = vld [vmem:[%s1 + $0x14] sm:$0xf]
        %v604 = vld [vmem:[%s1 + $0x18] sm:$0xf]
        %v605 = vld [vmem:[%s1 + $0x1c] sm:$0xf]
        %v606 = vld [vmem:[%s1 + $0x20] sm:$0xf]
        %v607 = vld [vmem:[%s1 + $0x24] sm:$0xf]
        %v608 = vld [vmem:[%s1 + $0x28] sm:$0xf]
        %v609 = vld [vmem:[%s1 + $0x2c] sm:$0xf]
        %v610 = vld [vmem:[%s1 + $0x30] sm:$0xf]
        %v611 = vld [vmem:[%s1 + $0x34] sm:$0xf]
        %v612 = vld [vmem:[%s1 + $0x38] sm:$0xf]
        %v613 = vld [vmem:[%s1 + $0x3c] sm:$0xf]
        %v622 = vunpack.c.l.b16 %v590
        %v623 = vunpack.c.l.b16 %v591
        %v624 = vunpack.c.l.b16 %v592
        %v625 = vunpack.c.l.b16 %v593
        %v626 = vunpack.c.l.b16 %v594
        %v627 = vunpack.c.l.b16 %v595
        %v628 = vunpack.c.l.b16 %v596
        %v629 = vunpack.c.l.b16 %v597
        %v630 = vpack.c.b16 %v623, %v622
        %v631 = vpack.c.b16 %v625, %v624
        %v632 = vpack.c.b16 %v627, %v626
        %v633 = vpack.c.b16 %v629, %v628
        %v654 = vunpack.c.l.b16 %v598
        %v655 = vunpack.c.l.b16 %v599
        %v656 = vunpack.c.l.b16 %v600
        %v657 = vunpack.c.l.b16 %v601
        %v658 = vunpack.c.l.b16 %v602
        %v659 = vunpack.c.l.b16 %v603
        %v660 = vunpack.c.l.b16 %v604
        %v661 = vunpack.c.l.b16 %v605
        %v662 = vunpack.c.l.b16 %v606
        %v663 = vunpack.c.l.b16 %v607
        %v664 = vunpack.c.l.b16 %v608
        %v665 = vunpack.c.l.b16 %v609
        %v666 = vunpack.c.l.b16 %v610
        %v667 = vunpack.c.l.b16 %v611
        %v668 = vunpack.c.l.b16 %v612
        %v669 = vunpack.c.l.b16 %v613
        %v670 = vpack.c.b16 %v655, %v654
        %v671 = vpack.c.b16 %v657, %v656
        %v672 = vpack.c.b16 %v659, %v658
        %v673 = vpack.c.b16 %v661, %v660
        %v674 = vpack.c.b16 %v663, %v662
        %v675 = vpack.c.b16 %v665, %v664
        %v676 = vpack.c.b16 %v667, %v666
        %v677 = vpack.c.b16 %v669, %v668
        %686 = vmatprep.subr.bf16.mxu0 0
        %687 = vmatpush1.bf16.msra.mxu0 %v677
        %688 = vmatprep.subr.bf16.mxu0 0
        %689 = vmatpush1.bf16.msra.mxu0 %v676
        %690 = vmatprep.subr.bf16.mxu0 0
        %691 = vmatpush1.bf16.msra.mxu0 %v675
        %692 = vmatprep.subr.bf16.mxu0 0
        %693 = vmatpush1.bf16.msra.mxu0 %v674
        %694 = vmatprep.subr.bf16.mxu0 0
        %695 = vmatpush1.bf16.msra.mxu0 %v673
        %696 = vmatprep.subr.bf16.mxu0 0
        %697 = vmatpush1.bf16.msra.mxu0 %v672
        %698 = vmatprep.subr.bf16.mxu0 0
        %699 = vmatpush1.bf16.msra.mxu0 %v671
        %700 = vmatprep.subr.bf16.mxu0 0
        %701 = vmatpush1.bf16.msra.mxu0 %v670
        %702 = vmatprep.subr.bf16.mxu0 0
        %703 = vmatpush2.bf16.msra.mxu0 0
        %704 = vmatprep.subr.bf16.mxu0 0
        %705 = vmatpush2.bf16.msra.mxu0 0
        %706 = vmatprep.subr.bf16.mxu0 0
        %707 = vmatpush2.bf16.msra.mxu0 0
        %708 = vmatprep.subr.bf16.mxu0 0
        %709 = vmatpush2.bf16.msra.mxu0 0
        %710 = vmatprep.subr.bf16.mxu0 0
        %711 = vmatpush2.bf16.msra.mxu0 0
        %712 = vmatprep.subr.bf16.mxu0 0
        %713 = vmatpush2.bf16.msra.mxu0 0
        %714 = vmatprep.subr.bf16.mxu0 0
        %715 = vmatpush2.bf16.msra.mxu0 0
        %716 = vmatprep.subr.bf16.mxu0 0
        %717 = vmatpush2.bf16.msra.mxu0 0
        %718 = vmatprep.mubr.bf16.mxu0 0
        %719 = vmatmul.mubr.bf16.gmra.mxu0 %v630
        %v720 = vpop.f32.mrf.mxu0
        %v721 = vadd.f32 0.0, %v720
        %v722 = vpop.f32.mrf.mxu0
        %v723 = vpop.f32.mrf.mxu0
        %v724 = vadd.f32 0.0, %v723
        %v725 = vpop.f32.mrf.mxu0
        %726 = vmatprep.mubr.bf16.mxu0 0
        %727 = vmatmul.mubr.bf16.gmra.mxu0 %v631
        %v728 = vpop.f32.mrf.mxu0
        %v729 = vadd.f32 0.0, %v728
        %v730 = vpop.f32.mrf.mxu0
        %v731 = vpop.f32.mrf.mxu0
        %v732 = vadd.f32 0.0, %v731
        %v733 = vpop.f32.mrf.mxu0
        %734 = vmatprep.mubr.bf16.mxu0 0
        %735 = vmatmul.mubr.bf16.gmra.mxu0 %v632
        %v736 = vpop.f32.mrf.mxu0
        %v737 = vadd.f32 0.0, %v736
        %v738 = vpop.f32.mrf.mxu0
        %v739 = vpop.f32.mrf.mxu0
        %v740 = vadd.f32 0.0, %v739
        %v741 = vpop.f32.mrf.mxu0
        %742 = vmatprep.mubr.bf16.mxu0 0
        %743 = vmatmul.mubr.bf16.gmra.mxu0 %v633
        %v744 = vpop.f32.mrf.mxu0
        %v745 = vadd.f32 0.0, %v744
        %v746 = vpop.f32.mrf.mxu0
        %v747 = vpop.f32.mrf.mxu0
        %v748 = vadd.f32 0.0, %v747
        %v749 = vpop.f32.mrf.mxu0
        %750 = vdwg.mxu0
        %v751 = vadd.f32 %v721, %v724
        %v752 = vadd.f32 %v751, %v729
        %v753 = vadd.f32 %v752, %v732
        %v754 = vadd.f32 %v753, %v737
        %v755 = vadd.f32 %v754, %v740
        %v756 = vadd.f32 %v755, %v745
        %v757 = vadd.f32 %v756, %v748
        %v758 = vrot.slane %v757, 4
        %v759 = vadd.f32 %v757, %v758
        %v760 = vrot.slane %v759, 2
        %v761 = vadd.f32 %v759, %v760
        %v762 = vrot.slane %v761, 1
        %v763 = vadd.f32 %v761, %v762
        %v764 = vrcp.pop 64.0
        %v765 = vmul.f32 %v763, %v764
        %v766 = vsub.f32 %v721, %v765
        %v767 = vsub.f32 %v724, %v765
        %v768 = vsub.f32 %v729, %v765
        %v769 = vsub.f32 %v732, %v765
        %v770 = vsub.f32 %v737, %v765
        %v771 = vsub.f32 %v740, %v765
        %v772 = vsub.f32 %v745, %v765
        %v773 = vsub.f32 %v748, %v765
        %v774 = vmul.f32 %v766, %v766
        %v775 = vmul.f32 %v767, %v767
        %v776 = vmul.f32 %v768, %v768
        %v777 = vmul.f32 %v769, %v769
        %v778 = vmul.f32 %v770, %v770
        %v779 = vmul.f32 %v771, %v771
        %v780 = vmul.f32 %v772, %v772
        %v781 = vmul.f32 %v773, %v773
        %v782 = vadd.f32 %v774, %v775
        %v783 = vadd.f32 %v782, %v776
        %v784 = vadd.f32 %v783, %v777
        %v785 = vadd.f32 %v784, %v778
        %v786 = vadd.f32 %v785, %v779
        %v787 = vadd.f32 %v786, %v780
        %v788 = vadd.f32 %v787, %v781
        %v789 = vrot.slane %v788, 4
        %v790 = vadd.f32 %v788, %v789
        %v791 = vrot.slane %v790, 2
        %v792 = vadd.f32 %v790, %v791
        %v793 = vrot.slane %v792, 1
        %v794 = vadd.f32 %v792, %v793
        %p795 = scmp.eq.s32.totalorder %s26, 0
        // Predicated region
        $region29: #{tpu_custom_call.1} parent=27 // pred_check
          %p796 = pneg %p795
        $region30: #{tpu_custom_call.1} parent=27 // pred_check_branch
          %798 = sbr.rel (%p796) target = $region32
        $region31: #{tpu_custom_call.1} parent=27 // pred_region
          %799 = vst [vmem:[%s178] sm:$0x1] %v765
          %800 = vst [vmem:[%s184] sm:$0x1] %v794
        $region32: #{tpu_custom_call.1} parent=27 // pred_fallthru
          _
        %p801 = scmp.gt.s32.totalorder %s26, 0
        // Predicated region
        $region33: #{tpu_custom_call.1} parent=27 // pred_check
          %p802 = pneg %p801
        $region34: #{tpu_custom_call.1} parent=27 // pred_check_branch
          %804 = sbr.rel (%p802) target = $region36
        $region35: #{tpu_custom_call.1} parent=27 // pred_region
          %s805 = scvt.s32.f32 %s26
          %v806 = vld [vmem:[%s178] sm:$0x1]
          %v807 = vsub.f32 %v765, %v806
          %s808 = sadd.f32 %s805, 1.0
          %v809 = vstv %s808
          %v810 = vrcp.pop %v809
          %v811 = vmul.f32 %v807, %v810
          %v812 = vadd.f32 %v806, %v811
          %813 = vst [vmem:[%s178] sm:$0x1] %v812
          %v814 = vld [vmem:[%s184] sm:$0x1]
          %v815 = vadd.f32 %v814, %v794
          %v816 = vmul.f32 %v807, %v807
          %s817 = smul.f32 %s805, 64.0
          %v818 = vstv %s808
          %v819 = vrcp.pop %v818
          %s820 = vtos %v819
          %s821 = smul.f32 %s817, %s820
          %v822 = vstv %s821
          %v823 = vmul.f32 %v816, %v822
          %v824 = vadd.f32 %v815, %v823
          %825 = vst [vmem:[%s184] sm:$0x1] %v824
        $region36: #{tpu_custom_call.1} parent=27 // pred_fallthru
          _
        %s826 = sand.u32 %s88, 1
        %s827 = scalar_lea.sflag [#allocation4], %s826
        %s828 = sand.u32 %s88, 1
        %s829 = scalar_lea.vmem [#allocation3], %s828
        %s830 = sand.u32 %s114, 1
        %s831 = scalar_lea.sflag [#allocation6], %s830
        %s832 = sand.u32 %s114, 1
        %s833 = scalar_lea.vmem [#allocation5], %s832
        // Predicated region
        $region37: #{tpu_custom_call.1} parent=27 // pred_check
          %p834 = pneg %p98
        $region38: #{tpu_custom_call.1} parent=27 // pred_check_branch
          %836 = sbr.rel (%p834) target = $region40
        $region39: #{tpu_custom_call.1} parent=27 // pred_region
          %s838 = ssub.s32 16, 16
          %839 = vsyncadd %s827, %s838
          %s840 = smul.addr %s25, 16
          %s841 = scalar_lea.hbm %s2, %s840
          %s843 = sshll.u32 %s829, 4
          %s844 = int_to_ptr.vmem [resolvable:$true] %s843
          %846 = dma.vmem_to_hbm [thread:$0]  %s844, 16, %s841, %s827
        $region40: #{tpu_custom_call.1} parent=27 // pred_fallthru
          _
        // Predicated region
        $region41: #{tpu_custom_call.1} parent=27 // pred_check
          %p847 = pneg %p124
        $region42: #{tpu_custom_call.1} parent=27 // pred_check_branch
          %849 = sbr.rel (%p847) target = $region44
        $region43: #{tpu_custom_call.1} parent=27 // pred_region
          %s851 = ssub.s32 16, 16
          %852 = vsyncadd %s831, %s851
          %s853 = smul.addr %s25, 16
          %s854 = scalar_lea.hbm %s3, %s853
          %s856 = sshll.u32 %s833, 4
          %s857 = int_to_ptr.vmem [resolvable:$true] %s856
          %859 = dma.vmem_to_hbm [thread:$0]  %s857, 16, %s854, %s831
        $region44: #{tpu_custom_call.1} parent=27 // pred_fallthru
          _
      $region28: #{tpu_custom_call.1} parent=5 // pred_fallthru
        _
      %p860 = scmp.le.s32.totalorder 2, %s16
      // Predicated region
      $region45: #{tpu_custom_call.1} parent=5 // pred_check
        %p861 = pneg %p860
      $region46: #{tpu_custom_call.1} parent=5 // pred_check_branch
        %863 = sbr.rel (%p861) target = $region48
      $region47: #{tpu_custom_call.1} parent=5 // pred_region
        %s864 = ssub.s32 %s16, 2
        // Predicated region
        $region49: #{tpu_custom_call.1} parent=47 // pred_check
          %p865 = pneg %p104
        $region50: #{tpu_custom_call.1} parent=47 // pred_check_branch
          %867 = sbr.rel (%p865) target = $region52
        $region51: #{tpu_custom_call.1} parent=47 // pred_region
          %s868 = sand.u32 %s89, 1
          %s869 = scalar_lea.sflag [#allocation4], %s868
          %s870 = sand.u32 %s89, 1
          %s871 = scalar_lea.vmem [#allocation3], %s870
          %872 = dma.done %s869, 16
        $region52: #{tpu_custom_call.1} parent=47 // pred_fallthru
          _
        // Predicated region
        $region53: #{tpu_custom_call.1} parent=47 // pred_check
          %p873 = pneg %p130
        $region54: #{tpu_custom_call.1} parent=47 // pred_check_branch
          %875 = sbr.rel (%p873) target = $region56
        $region55: #{tpu_custom_call.1} parent=47 // pred_region
          %s876 = sand.u32 %s115, 1
          %s877 = scalar_lea.sflag [#allocation6], %s876
          %s878 = sand.u32 %s115, 1
          %s879 = scalar_lea.vmem [#allocation5], %s878
          %880 = dma.done %s877, 16
        $region56: #{tpu_custom_call.1} parent=47 // pred_fallthru
          _
      $region48: #{tpu_custom_call.1} parent=5 // pred_fallthru
        _
    $region6: #{tpu_custom_call.1} parent=1 // loop_footer
      %s20 = sadd.s32 1, %s16
    $region7: #{tpu_custom_call.1} parent=1 // loop_footer_branch
      %15 = sbr.rel target = $region3
    $region8: #{tpu_custom_call.1} parent=1 // loop_exit
      _
    %881 = vsyncpa [#allocation4], 1
    %s882 = scalar_lea.sflag [#allocation4], 1
    %883 = vsyncpa %s882, 1
    %884 = vsyncpa [#allocation6], 1
    %s885 = scalar_lea.sflag [#allocation6], 1
    %886 = vsyncpa %s885, 1

</llo_original>
